<compile_context>
chip_gen: v7x
topology: tpu7x:2x2x1
jax: 0.10.0
libtpu: 0.0.40
codegen_flags: <defaults>
</compile_context>

<pallas_src>
import functools

import jax
import jax.numpy as jnp
from jax.experimental import pallas as pl
from jax.experimental.pallas import tpu as pltpu


# ----------------------------- fused Pallas kernel ---------------------------

def _make_decoder_kernel(n_layers, hidden_dim):
    H = hidden_dim

    def kernel(tok_ref, emb_ref, h_ref, c_ref, *rest):
        """One decode step (grid axis 0 = time step t).

        tok_ref:  [1, B, 1] int32       token ids for step t
        emb_ref:  [O, E]    bf16        embedding table           (resident)
        h_ref:    [L, B, H] f32         initial hidden (aliased with h_out)
        c_ref:    [L, B, H] f32         initial cell   (aliased with c_out)
        rest:     L x w_ih_t [D_in,4H] bf16, L x w_hh_t [H,4H] bf16,
                  L x bias [1,4H] f32, w_fc_t [H,O] bf16, b_fc [1,O] f32,
                  then outputs: pred [1,B,O] f32, h_out [L,B,H], c_out [L,B,H].
        h_out/c_out have constant output index_maps -> they stay VMEM-resident
        across all T grid steps and double as the carried LSTM state.
        """
        w_ih_refs = rest[:n_layers]
        w_hh_refs = rest[n_layers:2 * n_layers]
        b_refs = rest[2 * n_layers:3 * n_layers]
        wfc_ref = rest[3 * n_layers]
        bfc_ref = rest[3 * n_layers + 1]
        pred_ref, h_out_ref, c_out_ref = rest[3 * n_layers + 2:]

        B = tok_ref.shape[1]
        O = emb_ref.shape[0]

        # ---- initialize resident state from the (aliased) inputs at t == 0 --
        @pl.when(pl.program_id(0) == 0)
        def _():
            h_out_ref[...] = h_ref[...]
            c_out_ref[...] = c_ref[...]

        # ---- embedding lookup (one-hot MXU gather); dropout == identity -----
        tok = tok_ref[0]                                          # [B, 1] int32
        vocab = jax.lax.broadcasted_iota(jnp.int32, (B, O), 1)    # [B, O]
        one_hot = (tok == vocab).astype(emb_ref.dtype)            # [B, O] bf16
        x = jnp.dot(one_hot, emb_ref[...],
                    preferred_element_type=jnp.float32)           # [B, E] f32

        # ---- n_layers LSTM cells for this time step, unrolled ---------------
        for l in range(n_layers):
            h_prev = h_out_ref[l]                                 # [B, H] f32
            c_prev = c_out_ref[l]                                 # [B, H] f32
            gates = (jnp.dot(x.astype(w_ih_refs[l].dtype), w_ih_refs[l][...],
                             preferred_element_type=jnp.float32)
                     + jnp.dot(h_prev.astype(w_hh_refs[l].dtype),
                               w_hh_refs[l][...],
                               preferred_element_type=jnp.float32)
                     + b_refs[l][...])                            # [B, 4H] f32
            # Two full-vreg EUP passes, then cheap static lane slices.
            sig = jax.nn.sigmoid(gates)                           # [B, 4H]
            tnh = jnp.tanh(gates)                                 # [B, 4H]
            # PyTorch gate order: i, f, g, o.
            i_g = sig[:, 0 * H:1 * H]
            f_g = sig[:, 1 * H:2 * H]
            g_g = tnh[:, 2 * H:3 * H]
            o_g = sig[:, 3 * H:4 * H]
            c_new = f_g * c_prev + i_g * g_g
            h_new = o_g * jnp.tanh(c_new)
            h_out_ref[l] = h_new
            c_out_ref[l] = c_new
            x = h_new   # inter-layer LSTM dropout is identity in eval mode

        # ---- fc_out ----------------------------------------------------------
        pred = (jnp.dot(x.astype(wfc_ref.dtype), wfc_ref[...],
                        preferred_element_type=jnp.float32)
                + bfc_ref[...])                                   # [B, O] f32
        pred_ref[0] = pred.astype(pred_ref.dtype)

    return kernel


# ----------------------------- parameters -----------------------------------

def init_decoder_params(key, output_dim, embedding_dim, hidden_dim, n_layers):
    """Synthetic params, pre-transposed for [B,F] @ [F,G] MXU layout."""
    params = {}
    keys = jax.random.split(key, 3 + 4 * n_layers)
    k_iter = iter(keys)

    params["embedding"] = (0.1 * jax.random.normal(
        next(k_iter), (output_dim, embedding_dim), jnp.float32)
    ).astype(jnp.bfloat16)                                       # [O, E] bf16

    for l in range(n_layers):
        d_in = embedding_dim if l == 0 else hidden_dim
        w_ih = 0.1 * jax.random.normal(next(k_iter), (4 * hidden_dim, d_in),
                                       jnp.float32)
        w_hh = 0.1 * jax.random.normal(next(k_iter), (4 * hidden_dim, hidden_dim),
                                       jnp.float32)
        b_ih = 0.1 * jax.random.normal(next(k_iter), (4 * hidden_dim,), jnp.float32)
        b_hh = 0.1 * jax.random.normal(next(k_iter), (4 * hidden_dim,), jnp.float32)
        params[f"w_ih_{l}"] = w_ih.T.astype(jnp.bfloat16)        # [d_in, 4H] bf16
        params[f"w_hh_{l}"] = w_hh.T.astype(jnp.bfloat16)        # [H, 4H] bf16
        params[f"b_{l}"] = (b_ih + b_hh)[None, :]                # [1, 4H] f32

    w_fc = 0.1 * jax.random.normal(next(k_iter), (output_dim, hidden_dim),
                                   jnp.float32)
    b_fc = 0.1 * jax.random.normal(next(k_iter), (output_dim,), jnp.float32)
    params["w_fc_t"] = w_fc.T.astype(jnp.bfloat16)               # [H, O] bf16
    params["b_fc"] = b_fc[None, :]                               # [1, O] f32
    return params


# ----------------------------- pallas wrapper --------------------------------

def _const_spec(arr):
    nd = arr.ndim
    return pl.BlockSpec(arr.shape, lambda t, _nd=nd: (0,) * _nd)


def _decode_pallas(params, tokens_tb, hidden, cell):
    """Run T fused decode steps in a single pallas_call.

    tokens_tb: [T, B] int32; hidden/cell: [n_layers, B, H] f32.
    Returns (pred_seq [T, B, O] f32, h_out, c_out).
    """
    T, B = tokens_tb.shape
    n_layers, _, H = hidden.shape
    O, _ = params["embedding"].shape

    tok3d = tokens_tb.astype(jnp.int32).reshape(T, B, 1)
    layer_wih = [params[f"w_ih_{l}"] for l in range(n_layers)]
    layer_whh = [params[f"w_hh_{l}"] for l in range(n_layers)]
    layer_bs = [params[f"b_{l}"] for l in range(n_layers)]

    in_arrays = [tok3d, params["embedding"], hidden, cell,
                 *layer_wih, *layer_whh, *layer_bs,
                 params["w_fc_t"], params["b_fc"]]

    in_specs = [pl.BlockSpec((1, B, 1), lambda t: (t, 0, 0))]     # token step t
    in_specs += [_const_spec(a) for a in in_arrays[1:]]           # resident

    out_specs = (
        pl.BlockSpec((1, B, O), lambda t: (t, 0, 0)),             # pred step t
        pl.BlockSpec((n_layers, B, H), lambda t: (0, 0, 0)),      # resident h
        pl.BlockSpec((n_layers, B, H), lambda t: (0, 0, 0)),      # resident c
    )

    pred_seq, h_out, c_out = pl.pallas_call(
        _make_decoder_kernel(n_layers, H),
        out_shape=(jax.ShapeDtypeStruct((T, B, O), jnp.float32),
                   jax.ShapeDtypeStruct((n_layers, B, H), jnp.float32),
                   jax.ShapeDtypeStruct((n_layers, B, H), jnp.float32)),
        grid_spec=pltpu.PrefetchScalarGridSpec(
            num_scalar_prefetch=0,
            grid=(T,),
            in_specs=in_specs,
            out_specs=out_specs),
        compiler_params=pltpu.CompilerParams(
            dimension_semantics=("arbitrary",),   # sequential state carry
            # TODO(synk): raise when embedding/fc tables stop being toy-sized.
            vmem_limit_bytes=32 * 1024 * 1024),
        # in-place state update: hidden (arg 2) -> h_out (out 1), cell -> c_out
        input_output_aliases={2: 1, 3: 2},
    )(*in_arrays)

    return pred_seq, h_out, c_out


@functools.partial(jax.jit, donate_argnums=(2, 3))
def decoder_forward(params, tokens, hidden, cell):
    """Replicates Decoder.forward (eval mode): one token per batch element.

    tokens: [B] int32; hidden/cell: [n_layers, B, H].
    Returns (prediction [B, O], hidden, cell).  hidden/cell are donated so the
    aliased pallas state update is genuinely in-place.
    """
    B = tokens.shape[0]
    pred_seq, h_out, c_out = _decode_pallas(
        params, tokens.astype(jnp.int32).reshape(1, B), hidden, cell)
    return pred_seq[0], h_out, c_out


@functools.partial(jax.jit, donate_argnums=(2, 3))
def decoder_decode(params, tokens_tb, hidden, cell):
    """Multi-step greedy-style decode: T sequential Decoder.forward steps fused
    into one kernel (launch cost + weight DMA amortized over T)."""
    return _decode_pallas(params, tokens_tb, hidden, cell)


# ----------------------------- pure-JAX reference ----------------------------

def decoder_reference(params, tokens, hidden, cell):
    """Single decoder step, identical bf16 params / f32 accumulation."""
    n_layers, B, H = hidden.shape
    x = jnp.take(params["embedding"], tokens, axis=0).astype(jnp.float32)
    new_h, new_c = [], []
    for l in range(n_layers):
        gates = (jnp.dot(x.astype(jnp.bfloat16), params[f"w_ih_{l}"],
                         preferred_element_type=jnp.float32)
                 + jnp.dot(hidden[l].astype(jnp.bfloat16), params[f"w_hh_{l}"],
                           preferred_element_type=jnp.float32)
                 + params[f"b_{l}"])
        i_g = jax.nn.sigmoid(gates[:, 0 * H:1 * H])
        f_g = jax.nn.sigmoid(gates[:, 1 * H:2 * H])
        g_g = jnp.tanh(gates[:, 2 * H:3 * H])
        o_g = jax.nn.sigmoid(gates[:, 3 * H:4 * H])
        c_new = f_g * cell[l] + i_g * g_g
        h_new = o_g * jnp.tanh(c_new)
        new_h.append(h_new)
        new_c.append(c_new)
        x = h_new
    pred = (jnp.dot(x.astype(jnp.bfloat16), params["w_fc_t"],
                    preferred_element_type=jnp.float32) + params["b_fc"])
    return pred, jnp.stack(new_h, axis=0), jnp.stack(new_c, axis=0)


# --------------------------------- main --------------------------------------

if __name__ == "__main__":
    OUTPUT_DIM = 32       # vocab size
    EMBEDDING_DIM = 16
    HIDDEN_DIM = 32
    N_LAYERS = 2
    BATCH = 8             # note: B >= 128 needed to start filling MXU rows
    T_DECODE = 4

    root = jax.random.PRNGKey(0)
    k_par, k_tok, k_h, k_c, k_seq = jax.random.split(root, 5)

    params = init_decoder_params(k_par, OUTPUT_DIM, EMBEDDING_DIM,
                                 HIDDEN_DIM, N_LAYERS)

    def fresh_state():
        h0 = jax.random.normal(k_h, (N_LAYERS, BATCH, HIDDEN_DIM), jnp.float32)
        c0 = jax.random.normal(k_c, (N_LAYERS, BATCH, HIDDEN_DIM), jnp.float32)
        return h0, c0

    tokens = jax.random.randint(k_tok, (BATCH,), 0, OUTPUT_DIM, dtype=jnp.int32)

    # ---- single-step forward (matches Decoder.forward semantics) ------------
    hidden, cell = fresh_state()
    pred_r, h_r, c_r = decoder_reference(params, tokens, hidden, cell)
    # hidden/cell are donated by decoder_forward -> this is their last use.
    pred, h_out, c_out = decoder_forward(params, tokens, hidden, cell)
    jax.block_until_ready((pred, h_out, c_out))

    assert pred.shape == (BATCH, OUTPUT_DIM)
    assert h_out.shape == (N_LAYERS, BATCH, HIDDEN_DIM)
    assert c_out.shape == (N_LAYERS, BATCH, HIDDEN_DIM)
    assert jnp.allclose(pred, pred_r, atol=1e-2, rtol=1e-2)
    assert jnp.allclose(h_out, h_r, atol=1e-2, rtol=1e-2)
    assert jnp.allclose(c_out, c_r, atol=1e-2, rtol=1e-2)

    # ---- multi-step decode (grid over T, state/weights VMEM-resident) -------
    tokens_tb = jax.random.randint(k_seq, (T_DECODE, BATCH), 0, OUTPUT_DIM,
                                   dtype=jnp.int32)
    hidden, cell = fresh_state()
    h_s, c_s = hidden, cell
    preds_ref = []
    for t in range(T_DECODE):
        p_t, h_s, c_s = decoder_reference(params, tokens_tb[t], h_s, c_s)
        preds_ref.append(p_t)
    preds_ref = jnp.stack(preds_ref, axis=0)

    hidden, cell = fresh_state()   # fresh buffers (previous ones not donated)
    preds_seq, h_seq, c_seq = decoder_decode(params, tokens_tb, hidden, cell)
    jax.block_until_ready((preds_seq, h_seq, c_seq))

    assert preds_seq.shape == (T_DECODE, BATCH, OUTPUT_DIM)
    assert jnp.allclose(preds_seq, preds_ref, atol=1e-2, rtol=1e-2)
    assert jnp.allclose(h_seq, h_s, atol=1e-2, rtol=1e-2)
    assert jnp.allclose(c_seq, c_s, atol=1e-2, rtol=1e-2)

    print("KERNEL_OK")
</pallas_src>

<mosaic_0001>
module attributes {stable_mosaic.version = 11 : i64} {
  func.func @kernel(%arg0: i32, %arg1: memref<1x8x1xi32, #tpu.memory_space<vmem>>, %arg2: memref<32x16xbf16, #tpu.memory_space<vmem>>, %arg3: memref<2x8x32xf32, #tpu.memory_space<vmem>>, %arg4: memref<2x8x32xf32, #tpu.memory_space<vmem>>, %arg5: memref<16x128xbf16, #tpu.memory_space<vmem>>, %arg6: memref<32x128xbf16, #tpu.memory_space<vmem>>, %arg7: memref<32x128xbf16, #tpu.memory_space<vmem>>, %arg8: memref<32x128xbf16, #tpu.memory_space<vmem>>, %arg9: memref<1x128xf32, #tpu.memory_space<vmem>>, %arg10: memref<1x128xf32, #tpu.memory_space<vmem>>, %arg11: memref<32x32xbf16, #tpu.memory_space<vmem>>, %arg12: memref<1x32xf32, #tpu.memory_space<vmem>>, %arg13: memref<1x8x32xf32, #tpu.memory_space<vmem>>, %arg14: memref<2x8x32xf32, #tpu.memory_space<vmem>>, %arg15: memref<2x8x32xf32, #tpu.memory_space<vmem>>) attributes {dimension_semantics = [#tpu.dimension_semantics<arbitrary>], iteration_bounds = array<i64: 1>, scalar_prefetch = 0 : i64, scratch_operands = 0 : i64, tpu.core_type = #tpu.core_type<tc>, window_params = [{transform_indices = @transform_0, window_bounds = array<i64: 1, 8, 1>}, {pipeline_mode = #tpu.pipeline_mode<synchronous>, transform_indices = @transform_1, window_bounds = array<i64: 32, 16>}, {pipeline_mode = #tpu.pipeline_mode<synchronous>, transform_indices = @transform_2, window_bounds = array<i64: 2, 8, 32>}, {pipeline_mode = #tpu.pipeline_mode<synchronous>, transform_indices = @transform_3, window_bounds = array<i64: 2, 8, 32>}, {pipeline_mode = #tpu.pipeline_mode<synchronous>, transform_indices = @transform_4, window_bounds = array<i64: 16, 128>}, {pipeline_mode = #tpu.pipeline_mode<synchronous>, transform_indices = @transform_5, window_bounds = array<i64: 32, 128>}, {pipeline_mode = #tpu.pipeline_mode<synchronous>, transform_indices = @transform_6, window_bounds = array<i64: 32, 128>}, {pipeline_mode = #tpu.pipeline_mode<synchronous>, transform_indices = @transform_7, window_bounds = array<i64: 32, 128>}, {pipeline_mode = #tpu.pipeline_mode<synchronous>, transform_indices = @transform_8, window_bounds = array<i64: 1, 128>}, {pipeline_mode = #tpu.pipeline_mode<synchronous>, transform_indices = @transform_9, window_bounds = array<i64: 1, 128>}, {pipeline_mode = #tpu.pipeline_mode<synchronous>, transform_indices = @transform_10, window_bounds = array<i64: 32, 32>}, {pipeline_mode = #tpu.pipeline_mode<synchronous>, transform_indices = @transform_11, window_bounds = array<i64: 1, 32>}, {transform_indices = @transform_12, window_bounds = array<i64: 1, 8, 32>}, {pipeline_mode = #tpu.pipeline_mode<synchronous>, transform_indices = @transform_13, window_bounds = array<i64: 2, 8, 32>}, {pipeline_mode = #tpu.pipeline_mode<synchronous>, transform_indices = @transform_14, window_bounds = array<i64: 2, 8, 32>}]} {
    %c0_i32 = arith.constant 0 : i32
    %0 = arith.cmpi eq, %arg0, %c0_i32 : i32
    %1 = arith.extui %0 : i1 to i32
    %c0_i32_0 = arith.constant 0 : i32
    %2 = arith.cmpi ne, %1, %c0_i32_0 : i32
    scf.if %2 {
      %c0_54 = arith.constant 0 : index
      %c0_55 = arith.constant 0 : index
      %c0_56 = arith.constant 0 : index
      %92 = vector.load %arg3[%c0_54, %c0_55, %c0_56] : memref<2x8x32xf32, #tpu.memory_space<vmem>>, vector<2x8x32xf32>
      %c0_57 = arith.constant 0 : index
      %c0_58 = arith.constant 0 : index
      %c0_59 = arith.constant 0 : index
      %93 = vector.load %arg14[%c0_57, %c0_58, %c0_59] : memref<2x8x32xf32, #tpu.memory_space<vmem>>, vector<2x8x32xf32>
      tpu.vector_store %arg14[%c0_57, %c0_58, %c0_59], %92 {strides = array<i32>} : memref<2x8x32xf32, #tpu.memory_space<vmem>>, vector<2x8x32xf32>,
      %c0_60 = arith.constant 0 : index
      %c0_61 = arith.constant 0 : index
      %c0_62 = arith.constant 0 : index
      %94 = vector.load %arg4[%c0_60, %c0_61, %c0_62] : memref<2x8x32xf32, #tpu.memory_space<vmem>>, vector<2x8x32xf32>
      %c0_63 = arith.constant 0 : index
      %c0_64 = arith.constant 0 : index
      %c0_65 = arith.constant 0 : index
      %95 = vector.load %arg15[%c0_63, %c0_64, %c0_65] : memref<2x8x32xf32, #tpu.memory_space<vmem>>, vector<2x8x32xf32>
      tpu.vector_store %arg15[%c0_63, %c0_64, %c0_65], %94 {strides = array<i32>} : memref<2x8x32xf32, #tpu.memory_space<vmem>>, vector<2x8x32xf32>,
    } else {
    }
    %c0 = arith.constant 0 : index
    %c0_1 = arith.constant 0 : index
    %c0_2 = arith.constant 0 : index
    %3 = vector.load %arg1[%c0, %c0_1, %c0_2] : memref<1x8x1xi32, #tpu.memory_space<vmem>>, vector<1x8x1xi32>
    %4 = vector.shape_cast %3 : vector<1x8x1xi32> to vector<8x1xi32>
    %5 = tpu.iota {dimensions = array<i32: 1>} : vector<8x32xi32>
    %6 = vector.broadcast %4 : vector<8x1xi32> to vector<8x32xi32>
    %7 = arith.cmpi eq, %6, %5 : vector<8x32xi32>
    %8 = arith.extui %7 : vector<8x32xi1> to vector<8x32xi32>
    %9 = arith.sitofp %8 : vector<8x32xi32> to vector<8x32xf32>
    %10 = arith.truncf %9 : vector<8x32xf32> to vector<8x32xbf16>
    %c0_3 = arith.constant 0 : index
    %c0_4 = arith.constant 0 : index
    %11 = vector.load %arg2[%c0_3, %c0_4] : memref<32x16xbf16, #tpu.memory_space<vmem>>, vector<32x16xbf16>
    %cst = arith.constant dense<0.000000e+00> : vector<8x16xf32>
    %12 = tpu.matmul %10, %11, %cst {dimension_numbers = #tpu.dot_dimension_numbers<[1], [0], [0], [1], [0, 0, 1, 1], [], []>} : vector<8x32xbf16>, vector<32x16xbf16>, vector<8x16xf32> -> vector<8x16xf32>
    %c0_5 = arith.constant 0 : index
    %c0_6 = arith.constant 0 : index
    %c0_7 = arith.constant 0 : index
    %13 = vector.load %arg14[%c0_5, %c0_6, %c0_7] : memref<2x8x32xf32, #tpu.memory_space<vmem>>, vector<1x8x32xf32>
    %14 = vector.shape_cast %13 : vector<1x8x32xf32> to vector<8x32xf32>
    %c0_8 = arith.constant 0 : index
    %c0_9 = arith.constant 0 : index
    %c0_10 = arith.constant 0 : index
    %15 = vector.load %arg15[%c0_8, %c0_9, %c0_10] : memref<2x8x32xf32, #tpu.memory_space<vmem>>, vector<1x8x32xf32>
    %16 = vector.shape_cast %15 : vector<1x8x32xf32> to vector<8x32xf32>
    %17 = arith.truncf %12 : vector<8x16xf32> to vector<8x16xbf16>
    %c0_11 = arith.constant 0 : index
    %c0_12 = arith.constant 0 : index
    %18 = vector.load %arg5[%c0_11, %c0_12] : memref<16x128xbf16, #tpu.memory_space<vmem>>, vector<16x128xbf16>
    %cst_13 = arith.constant dense<0.000000e+00> : vector<8x128xf32>
    %19 = tpu.matmul %17, %18, %cst_13 {dimension_numbers = #tpu.dot_dimension_numbers<[1], [0], [0], [1], [0, 0, 1, 1], [], []>} : vector<8x16xbf16>, vector<16x128xbf16>, vector<8x128xf32> -> vector<8x128xf32>
    %20 = arith.truncf %14 : vector<8x32xf32> to vector<8x32xbf16>
    %c0_14 = arith.constant 0 : index
    %c0_15 = arith.constant 0 : index
    %21 = vector.load %arg7[%c0_14, %c0_15] : memref<32x128xbf16, #tpu.memory_space<vmem>>, vector<32x128xbf16>
    %cst_16 = arith.constant dense<0.000000e+00> : vector<8x128xf32>
    %22 = tpu.matmul %20, %21, %cst_16 {dimension_numbers = #tpu.dot_dimension_numbers<[1], [0], [0], [1], [0, 0, 1, 1], [], []>} : vector<8x32xbf16>, vector<32x128xbf16>, vector<8x128xf32> -> vector<8x128xf32>
    %23 = arith.addf %19, %22 : vector<8x128xf32>
    %c0_17 = arith.constant 0 : index
    %c0_18 = arith.constant 0 : index
    %24 = vector.load %arg9[%c0_17, %c0_18] : memref<1x128xf32, #tpu.memory_space<vmem>>, vector<1x128xf32>
    %25 = vector.broadcast %24 : vector<1x128xf32> to vector<8x128xf32>
    %26 = arith.addf %23, %25 : vector<8x128xf32>
    %27 = arith.negf %26 : vector<8x128xf32>
    %28 = math.exp %27 : vector<8x128xf32>
    %cst_19 = arith.constant 1.000000e+00 : f32
    %29 = vector.broadcast %cst_19 : f32 to vector<8x128xf32>
    %30 = arith.addf %29, %28 : vector<8x128xf32>
    %31 = arith.divf %29, %30 : vector<8x128xf32>
    %32 = math.tanh %26 : vector<8x128xf32>
    %33 = vector.extract_strided_slice %31 {offsets = [0, 0], sizes = [8, 32], strides = [1, 1]} : vector<8x128xf32> to vector<8x32xf32>
    %34 = vector.extract_strided_slice %31 {offsets = [0, 32], sizes = [8, 32], strides = [1, 1]} : vector<8x128xf32> to vector<8x32xf32>
    %35 = vector.extract_strided_slice %32 {offsets = [0, 64], sizes = [8, 32], strides = [1, 1]} : vector<8x128xf32> to vector<8x32xf32>
    %36 = vector.extract_strided_slice %31 {offsets = [0, 96], sizes = [8, 32], strides = [1, 1]} : vector<8x128xf32> to vector<8x32xf32>
    %37 = arith.mulf %34, %16 : vector<8x32xf32>
    %38 = arith.mulf %33, %35 : vector<8x32xf32>
    %39 = arith.addf %37, %38 : vector<8x32xf32>
    %40 = math.tanh %39 : vector<8x32xf32>
    %41 = arith.mulf %36, %40 : vector<8x32xf32>
    %c0_20 = arith.constant 0 : index
    %c0_21 = arith.constant 0 : index
    %c0_22 = arith.constant 0 : index
    %42 = vector.load %arg14[%c0_20, %c0_21, %c0_22] : memref<2x8x32xf32, #tpu.memory_space<vmem>>, vector<1x8x32xf32>
    %43 = vector.shape_cast %42 : vector<1x8x32xf32> to vector<8x32xf32>
    %44 = vector.shape_cast %41 : vector<8x32xf32> to vector<1x8x32xf32>
    tpu.vector_store %arg14[%c0_20, %c0_21, %c0_22], %44 {strides = array<i32>} : memref<2x8x32xf32, #tpu.memory_space<vmem>>, vector<1x8x32xf32>,
    %c0_23 = arith.constant 0 : index
    %c0_24 = arith.constant 0 : index
    %c0_25 = arith.constant 0 : index
    %45 = vector.load %arg15[%c0_23, %c0_24, %c0_25] : memref<2x8x32xf32, #tpu.memory_space<vmem>>, vector<1x8x32xf32>
    %46 = vector.shape_cast %45 : vector<1x8x32xf32> to vector<8x32xf32>
    %47 = vector.shape_cast %39 : vector<8x32xf32> to vector<1x8x32xf32>
    tpu.vector_store %arg15[%c0_23, %c0_24, %c0_25], %47 {strides = array<i32>} : memref<2x8x32xf32, #tpu.memory_space<vmem>>, vector<1x8x32xf32>,
    %c1 = arith.constant 1 : index
    %c0_26 = arith.constant 0 : index
    %c0_27 = arith.constant 0 : index
    %48 = vector.load %arg14[%c1, %c0_26, %c0_27] : memref<2x8x32xf32, #tpu.memory_space<vmem>>, vector<1x8x32xf32>
    %49 = vector.shape_cast %48 : vector<1x8x32xf32> to vector<8x32xf32>
    %c1_28 = arith.constant 1 : index
    %c0_29 = arith.constant 0 : index
    %c0_30 = arith.constant 0 : index
    %50 = vector.load %arg15[%c1_28, %c0_29, %c0_30] : memref<2x8x32xf32, #tpu.memory_space<vmem>>, vector<1x8x32xf32>
    %51 = vector.shape_cast %50 : vector<1x8x32xf32> to vector<8x32xf32>
    %52 = arith.truncf %41 : vector<8x32xf32> to vector<8x32xbf16>
    %c0_31 = arith.constant 0 : index
    %c0_32 = arith.constant 0 : index
    %53 = vector.load %arg6[%c0_31, %c0_32] : memref<32x128xbf16, #tpu.memory_space<vmem>>, vector<32x128xbf16>
    %cst_33 = arith.constant dense<0.000000e+00> : vector<8x128xf32>
    %54 = tpu.matmul %52, %53, %cst_33 {dimension_numbers = #tpu.dot_dimension_numbers<[1], [0], [0], [1], [0, 0, 1, 1], [], []>} : vector<8x32xbf16>, vector<32x128xbf16>, vector<8x128xf32> -> vector<8x128xf32>
    %55 = arith.truncf %49 : vector<8x32xf32> to vector<8x32xbf16>
    %c0_34 = arith.constant 0 : index
    %c0_35 = arith.constant 0 : index
    %56 = vector.load %arg8[%c0_34, %c0_35] : memref<32x128xbf16, #tpu.memory_space<vmem>>, vector<32x128xbf16>
    %cst_36 = arith.constant dense<0.000000e+00> : vector<8x128xf32>
    %57 = tpu.matmul %55, %56, %cst_36 {dimension_numbers = #tpu.dot_dimension_numbers<[1], [0], [0], [1], [0, 0, 1, 1], [], []>} : vector<8x32xbf16>, vector<32x128xbf16>, vector<8x128xf32> -> vector<8x128xf32>
    %58 = arith.addf %54, %57 : vector<8x128xf32>
    %c0_37 = arith.constant 0 : index
    %c0_38 = arith.constant 0 : index
    %59 = vector.load %arg10[%c0_37, %c0_38] : memref<1x128xf32, #tpu.memory_space<vmem>>, vector<1x128xf32>
    %60 = vector.broadcast %59 : vector<1x128xf32> to vector<8x128xf32>
    %61 = arith.addf %58, %60 : vector<8x128xf32>
    %62 = arith.negf %61 : vector<8x128xf32>
    %63 = math.exp %62 : vector<8x128xf32>
    %cst_39 = arith.constant 1.000000e+00 : f32
    %64 = vector.broadcast %cst_39 : f32 to vector<8x128xf32>
    %65 = arith.addf %64, %63 : vector<8x128xf32>
    %66 = arith.divf %64, %65 : vector<8x128xf32>
    %67 = math.tanh %61 : vector<8x128xf32>
    %68 = vector.extract_strided_slice %66 {offsets = [0, 0], sizes = [8, 32], strides = [1, 1]} : vector<8x128xf32> to vector<8x32xf32>
    %69 = vector.extract_strided_slice %66 {offsets = [0, 32], sizes = [8, 32], strides = [1, 1]} : vector<8x128xf32> to vector<8x32xf32>
    %70 = vector.extract_strided_slice %67 {offsets = [0, 64], sizes = [8, 32], strides = [1, 1]} : vector<8x128xf32> to vector<8x32xf32>
    %71 = vector.extract_strided_slice %66 {offsets = [0, 96], sizes = [8, 32], strides = [1, 1]} : vector<8x128xf32> to vector<8x32xf32>
    %72 = arith.mulf %69, %51 : vector<8x32xf32>
    %73 = arith.mulf %68, %70 : vector<8x32xf32>
    %74 = arith.addf %72, %73 : vector<8x32xf32>
    %75 = math.tanh %74 : vector<8x32xf32>
    %76 = arith.mulf %71, %75 : vector<8x32xf32>
    %c1_40 = arith.constant 1 : index
    %c0_41 = arith.constant 0 : index
    %c0_42 = arith.constant 0 : index
    %77 = vector.load %arg14[%c1_40, %c0_41, %c0_42] : memref<2x8x32xf32, #tpu.memory_space<vmem>>, vector<1x8x32xf32>
    %78 = vector.shape_cast %77 : vector<1x8x32xf32> to vector<8x32xf32>
    %79 = vector.shape_cast %76 : vector<8x32xf32> to vector<1x8x32xf32>
    tpu.vector_store %arg14[%c1_40, %c0_41, %c0_42], %79 {strides = array<i32>} : memref<2x8x32xf32, #tpu.memory_space<vmem>>, vector<1x8x32xf32>,
    %c1_43 = arith.constant 1 : index
    %c0_44 = arith.constant 0 : index
    %c0_45 = arith.constant 0 : index
    %80 = vector.load %arg15[%c1_43, %c0_44, %c0_45] : memref<2x8x32xf32, #tpu.memory_space<vmem>>, vector<1x8x32xf32>
    %81 = vector.shape_cast %80 : vector<1x8x32xf32> to vector<8x32xf32>
    %82 = vector.shape_cast %74 : vector<8x32xf32> to vector<1x8x32xf32>
    tpu.vector_store %arg15[%c1_43, %c0_44, %c0_45], %82 {strides = array<i32>} : memref<2x8x32xf32, #tpu.memory_space<vmem>>, vector<1x8x32xf32>,
    %83 = arith.truncf %76 : vector<8x32xf32> to vector<8x32xbf16>
    %c0_46 = arith.constant 0 : index
    %c0_47 = arith.constant 0 : index
    %84 = vector.load %arg11[%c0_46, %c0_47] : memref<32x32xbf16, #tpu.memory_space<vmem>>, vector<32x32xbf16>
    %cst_48 = arith.constant dense<0.000000e+00> : vector<8x32xf32>
    %85 = tpu.matmul %83, %84, %cst_48 {dimension_numbers = #tpu.dot_dimension_numbers<[1], [0], [0], [1], [0, 0, 1, 1], [], []>} : vector<8x32xbf16>, vector<32x32xbf16>, vector<8x32xf32> -> vector<8x32xf32>
    %c0_49 = arith.constant 0 : index
    %c0_50 = arith.constant 0 : index
    %86 = vector.load %arg12[%c0_49, %c0_50] : memref<1x32xf32, #tpu.memory_space<vmem>>, vector<1x32xf32>
    %87 = vector.broadcast %86 : vector<1x32xf32> to vector<8x32xf32>
    %88 = arith.addf %85, %87 : vector<8x32xf32>
    %c0_51 = arith.constant 0 : index
    %c0_52 = arith.constant 0 : index
    %c0_53 = arith.constant 0 : index
    %89 = vector.load %arg13[%c0_51, %c0_52, %c0_53] : memref<1x8x32xf32, #tpu.memory_space<vmem>>, vector<1x8x32xf32>
    %90 = vector.shape_cast %89 : vector<1x8x32xf32> to vector<8x32xf32>
    %91 = vector.shape_cast %88 : vector<8x32xf32> to vector<1x8x32xf32>
    tpu.vector_store %arg13[%c0_51, %c0_52, %c0_53], %91 {strides = array<i32>} : memref<1x8x32xf32, #tpu.memory_space<vmem>>, vector<1x8x32xf32>,
    return
  }
  func.func @transform_0(%arg0: i32) -> (i32, i32, i32) {
    %c0_i32 = arith.constant 0 : i32
    %c0_i32_0 = arith.constant 0 : i32
    %c0_i32_1 = arith.constant 0 : i32
    return %arg0, %c0_i32, %c0_i32_0 : i32, i32, i32
  }
  func.func @transform_1(%arg0: i32) -> (i32, i32) {
    %c0_i32 = arith.constant 0 : i32
    %c0_i32_0 = arith.constant 0 : i32
    %c0_i32_1 = arith.constant 0 : i32
    return %c0_i32, %c0_i32_0 : i32, i32
  }
  func.func @transform_2(%arg0: i32) -> (i32, i32, i32) {
    %c0_i32 = arith.constant 0 : i32
    %c0_i32_0 = arith.constant 0 : i32
    %c0_i32_1 = arith.constant 0 : i32
    %c0_i32_2 = arith.constant 0 : i32
    return %c0_i32, %c0_i32_0, %c0_i32_1 : i32, i32, i32
  }
  func.func @transform_3(%arg0: i32) -> (i32, i32, i32) {
    %c0_i32 = arith.constant 0 : i32
    %c0_i32_0 = arith.constant 0 : i32
    %c0_i32_1 = arith.constant 0 : i32
    %c0_i32_2 = arith.constant 0 : i32
    return %c0_i32, %c0_i32_0, %c0_i32_1 : i32, i32, i32
  }
  func.func @transform_4(%arg0: i32) -> (i32, i32) {
    %c0_i32 = arith.constant 0 : i32
    %c0_i32_0 = arith.constant 0 : i32
    %c0_i32_1 = arith.constant 0 : i32
    return %c0_i32, %c0_i32_0 : i32, i32
  }
  func.func @transform_5(%arg0: i32) -> (i32, i32) {
    %c0_i32 = arith.constant 0 : i32
    %c0_i32_0 = arith.constant 0 : i32
    %c0_i32_1 = arith.constant 0 : i32
    return %c0_i32, %c0_i32_0 : i32, i32
  }
  func.func @transform_6(%arg0: i32) -> (i32, i32) {
    %c0_i32 = arith.constant 0 : i32
    %c0_i32_0 = arith.constant 0 : i32
    %c0_i32_1 = arith.constant 0 : i32
    return %c0_i32, %c0_i32_0 : i32, i32
  }
  func.func @transform_7(%arg0: i32) -> (i32, i32) {
    %c0_i32 = arith.constant 0 : i32
    %c0_i32_0 = arith.constant 0 : i32
    %c0_i32_1 = arith.constant 0 : i32
    return %c0_i32, %c0_i32_0 : i32, i32
  }
  func.func @transform_8(%arg0: i32) -> (i32, i32) {
    %c0_i32 = arith.constant 0 : i32
    %c0_i32_0 = arith.constant 0 : i32
    %c0_i32_1 = arith.constant 0 : i32
    return %c0_i32, %c0_i32_0 : i32, i32
  }
  func.func @transform_9(%arg0: i32) -> (i32, i32) {
    %c0_i32 = arith.constant 0 : i32
    %c0_i32_0 = arith.constant 0 : i32
    %c0_i32_1 = arith.constant 0 : i32
    return %c0_i32, %c0_i32_0 : i32, i32
  }
  func.func @transform_10(%arg0: i32) -> (i32, i32) {
    %c0_i32 = arith.constant 0 : i32
    %c0_i32_0 = arith.constant 0 : i32
    %c0_i32_1 = arith.constant 0 : i32
    return %c0_i32, %c0_i32_0 : i32, i32
  }
  func.func @transform_11(%arg0: i32) -> (i32, i32) {
    %c0_i32 = arith.constant 0 : i32
    %c0_i32_0 = arith.constant 0 : i32
    %c0_i32_1 = arith.constant 0 : i32
    return %c0_i32, %c0_i32_0 : i32, i32
  }
  func.func @transform_12(%arg0: i32) -> (i32, i32, i32) {
    %c0_i32 = arith.constant 0 : i32
    %c0_i32_0 = arith.constant 0 : i32
    %c0_i32_1 = arith.constant 0 : i32
    return %arg0, %c0_i32, %c0_i32_0 : i32, i32, i32
  }
  func.func @transform_13(%arg0: i32) -> (i32, i32, i32) {
    %c0_i32 = arith.constant 0 : i32
    %c0_i32_0 = arith.constant 0 : i32
    %c0_i32_1 = arith.constant 0 : i32
    %c0_i32_2 = arith.constant 0 : i32
    return %c0_i32, %c0_i32_0, %c0_i32_1 : i32, i32, i32
  }
  func.func @transform_14(%arg0: i32) -> (i32, i32, i32) {
    %c0_i32 = arith.constant 0 : i32
    %c0_i32_0 = arith.constant 0 : i32
    %c0_i32_1 = arith.constant 0 : i32
    %c0_i32_2 = arith.constant 0 : i32
    return %c0_i32, %c0_i32_0, %c0_i32_1 : i32, i32, i32
  }
}

</mosaic_0001>

<llo_original>
// kernel: decoder_forward.1
$region0: #{decoder_forward.1}
  #allocation0 [shape = 'u32[]', space=smem, size = 0x4, offset = 0x4, fixed_abs, tag = 'smem constant byte address 0x4 - core index']
  #allocation1 [shape = 'u32[144,128]{1,0:T(1,128)}', space=vmem, size = 0x12000, scoped, tag = 'internal scratch']
  %s0 = inlined_call_operand.vmem [shape: s32[1,8,1], index: 0, kind: input, shape index: {}]
  %s1 = inlined_call_operand.vmem [shape: bf16[32,16], index: 1, kind: input, shape index: {}]
  %s2 = inlined_call_operand.vmem [shape: f32[2,8,32], index: 2, kind: input, shape index: {}, may-alias: {2,13}]
  %s3 = inlined_call_operand.hbm [shape: f32[2,8,32], index: 3, kind: input, shape index: {}, may-alias: {3,14}]
  %s4 = inlined_call_operand.hbm [shape: bf16[16,128], index: 4, kind: input, shape index: {}]
  %s5 = inlined_call_operand.vmem [shape: bf16[32,128], index: 5, kind: input, shape index: {}]
  %s6 = inlined_call_operand.vmem [shape: bf16[32,128], index: 6, kind: input, shape index: {}]
  %s7 = inlined_call_operand.vmem [shape: bf16[32,128], index: 7, kind: input, shape index: {}]
  %s8 = inlined_call_operand.hbm [shape: f32[1,128], index: 8, kind: input, shape index: {}]
  %s9 = inlined_call_operand.hbm [shape: f32[1,128], index: 9, kind: input, shape index: {}]
  %s10 = inlined_call_operand.hbm [shape: bf16[32,32], index: 10, kind: input, shape index: {}]
  %s11 = inlined_call_operand.hbm [shape: f32[1,32], index: 11, kind: input, shape index: {}]
  %s12 = inlined_call_operand.hbm [shape: f32[1,8,32], index: 12, kind: output, shape index: {0}]
  %s13 = inlined_call_operand.vmem [shape: f32[2,8,32], index: 13, kind: output, shape index: {1}, may-alias: {2,13}]
  %s14 = inlined_call_operand.hbm [shape: f32[2,8,32], index: 14, kind: output, shape index: {2}, may-alias: {3,14}]
  %15 = xla_tuple %s12, %s13, %s14
  %s16 = sld [smem:[#allocation0]]
  $region102: #{decoder_forward.1} parent=0
    _
  %s18 = ssub.s32 1, %s16
  %s19 = scalar_select 0, %s18, %s16
  $region1: #{decoder_forward.1} parent=0
    #allocation2 [shape = 'u8[8192]{0}', space=vmem, size = 0x2000, scoped, tag = 'input window, operand 3, single buffered']
    #allocation3 [shape = 's32[1]{0}', space=sflag, size = 0x4, scoped, tag = 'scoped memory for decoder_forward.1']
    #allocation4 [shape = 's32[1]{0}', space=sflag, size = 0x4, scoped, tag = 'scoped memory for decoder_forward.1']
    #allocation5 [shape = 'u8[4096]{0}', space=vmem, size = 0x1000, scoped, tag = 'input window, operand 4, single buffered']
    #allocation6 [shape = 's32[1]{0}', space=sflag, size = 0x4, scoped, tag = 'scoped memory for decoder_forward.1']
    #allocation7 [shape = 'u8[512]{0}', space=vmem, size = 0x400, scoped, tag = 'input window, operand 8, single buffered']
    #allocation8 [shape = 'u8[512]{0}', space=vmem, size = 0x400, scoped, tag = 'input window, operand 9, single buffered']
    #allocation9 [shape = 's32[1]{0}', space=sflag, size = 0x4, scoped, tag = 'scoped memory for decoder_forward.1']
    #allocation10 [shape = 'u8[8192]{0}', space=vmem, size = 0x2000, scoped, tag = 'input window, operand 10, single buffered']
    #allocation11 [shape = 'u8[512]{0}', space=vmem, size = 0x400, scoped, tag = 'input window, operand 11, single buffered']
    #allocation12 [shape = 's32[1]{0}', space=sflag, size = 0x4, scoped, tag = 'scoped memory for decoder_forward.1']
    #allocation13 [shape = 'u8[4096]{0}', space=vmem, size = 0x1000, scoped, tag = 'output window, operand 0, single buffered']
    #allocation14 [shape = 'u8[8192]{0}', space=vmem, size = 0x2000, scoped, tag = 'output window, operand 2, single buffered']
    #allocation15 [shape = 's32[1]{0}', space=sflag, size = 0x4, scoped, tag = 'scoped memory for decoder_forward.1']
    %20 = vsyncpa [#allocation3], 0
    %21 = vsyncpa [#allocation6], 0
    %22 = vsyncpa [#allocation9], 0
    %23 = vsyncpa [#allocation12], 0
    %24 = vsyncpa [#allocation4], 0
    %25 = vsyncpa [#allocation15], 0
    // Predicated region
    $region2: #{decoder_forward.1} parent=1 // pred_check
      _
    $region3: #{decoder_forward.1} parent=1 // pred_check_branch
      %27 = sbr.rel (0) target = $region5
    $region4: #{decoder_forward.1} parent=1 // pred_region
      _
    $region5: #{decoder_forward.1} parent=1 // pred_fallthru
      _
    // Predicated region
    $region6: #{decoder_forward.1} parent=1 // pred_check
      _
    $region7: #{decoder_forward.1} parent=1 // pred_check_branch
      %29 = sbr.rel (0) target = $region9
    $region8: #{decoder_forward.1} parent=1 // pred_region
      _
    $region9: #{decoder_forward.1} parent=1 // pred_fallthru
      _
    // Predicated region
    $region10: #{decoder_forward.1} parent=1 // pred_check
      _
    $region11: #{decoder_forward.1} parent=1 // pred_check_branch
      %31 = sbr.rel (0) target = $region13
    $region12: #{decoder_forward.1} parent=1 // pred_region
      _
    $region13: #{decoder_forward.1} parent=1 // pred_fallthru
      _
    // Predicated region
    $region14: #{decoder_forward.1} parent=1 // pred_check
      _
    $region15: #{decoder_forward.1} parent=1 // pred_check_branch
      %33 = sbr.rel (0) target = $region17
    $region16: #{decoder_forward.1} parent=1 // pred_region
      %s35 = ssub.s32 256, 256
      %36 = vsyncadd [#allocation3], %s35
      %s37 = sshll.u32 [#allocation2], 4
      %s38 = int_to_ptr.vmem [resolvable:$true] %s37
      %43 = dma.hbm_to_vmem [thread:$0]  %s3, 256, %s38, [#allocation3], 128, 128, 8
    $region17: #{decoder_forward.1} parent=1 // pred_fallthru
      _
    // Predicated region
    $region18: #{decoder_forward.1} parent=1 // pred_check
      _
    $region19: #{decoder_forward.1} parent=1 // pred_check_branch
      %45 = sbr.rel (0) target = $region21
    $region20: #{decoder_forward.1} parent=1 // pred_region
      %s47 = ssub.s32 128, 128
      %48 = vsyncadd [#allocation6], %s47
      %s49 = sshll.u32 [#allocation5], 4
      %s50 = int_to_ptr.vmem [resolvable:$true] %s49
      %55 = dma.hbm_to_vmem [thread:$0]  %s4, 128, %s50, [#allocation6], 64, 64, 4
    $region21: #{decoder_forward.1} parent=1 // pred_fallthru
      _
    // Predicated region
    $region22: #{decoder_forward.1} parent=1 // pred_check
      _
    $region23: #{decoder_forward.1} parent=1 // pred_check_branch
      %57 = sbr.rel (0) target = $region25
    $region24: #{decoder_forward.1} parent=1 // pred_region
      _
    $region25: #{decoder_forward.1} parent=1 // pred_fallthru
      _
    // Predicated region
    $region26: #{decoder_forward.1} parent=1 // pred_check
      _
    $region27: #{decoder_forward.1} parent=1 // pred_check_branch
      %59 = sbr.rel (0) target = $region29
    $region28: #{decoder_forward.1} parent=1 // pred_region
      _
    $region29: #{decoder_forward.1} parent=1 // pred_fallthru
      _
    // Predicated region
    $region30: #{decoder_forward.1} parent=1 // pred_check
      _
    $region31: #{decoder_forward.1} parent=1 // pred_check_branch
      %61 = sbr.rel (0) target = $region33
    $region32: #{decoder_forward.1} parent=1 // pred_region
      _
    $region33: #{decoder_forward.1} parent=1 // pred_fallthru
      _
    // Predicated region
    $region34: #{decoder_forward.1} parent=1 // pred_check
      _
    $region35: #{decoder_forward.1} parent=1 // pred_check_branch
      %63 = sbr.rel (0) target = $region37
    $region36: #{decoder_forward.1} parent=1 // pred_region
      %s65 = ssub.s32 16, 16
      %66 = vsyncadd [#allocation6], %s65
      %s68 = sshll.u32 [#allocation7], 4
      %s69 = int_to_ptr.vmem [resolvable:$true] %s68
      %71 = dma.hbm_to_vmem [thread:$0]  %s8, 16, %s69, [#allocation6]
    $region37: #{decoder_forward.1} parent=1 // pred_fallthru
      _
    // Predicated region
    $region38: #{decoder_forward.1} parent=1 // pred_check
      _
    $region39: #{decoder_forward.1} parent=1 // pred_check_branch
      %73 = sbr.rel (0) target = $region41
    $region40: #{decoder_forward.1} parent=1 // pred_region
      %s75 = ssub.s32 16, 16
      %76 = vsyncadd [#allocation9], %s75
      %s78 = sshll.u32 [#allocation8], 4
      %s79 = int_to_ptr.vmem [resolvable:$true] %s78
      %81 = dma.hbm_to_vmem [thread:$0]  %s9, 16, %s79, [#allocation9]
    $region41: #{decoder_forward.1} parent=1 // pred_fallthru
      _
    // Predicated region
    $region42: #{decoder_forward.1} parent=1 // pred_check
      _
    $region43: #{decoder_forward.1} parent=1 // pred_check_branch
      %83 = sbr.rel (0) target = $region45
    $region44: #{decoder_forward.1} parent=1 // pred_region
      %s85 = ssub.s32 256, 256
      %86 = vsyncadd [#allocation9], %s85
      %s87 = sshll.u32 [#allocation10], 4
      %s88 = int_to_ptr.vmem [resolvable:$true] %s87
      %93 = dma.hbm_to_vmem [thread:$0]  %s10, 256, %s88, [#allocation9], 64, 64, 4
    $region45: #{decoder_forward.1} parent=1 // pred_fallthru
      _
    // Predicated region
    $region46: #{decoder_forward.1} parent=1 // pred_check
      _
    $region47: #{decoder_forward.1} parent=1 // pred_check_branch
      %95 = sbr.rel (0) target = $region49
    $region48: #{decoder_forward.1} parent=1 // pred_region
      %s97 = ssub.s32 16, 16
      %98 = vsyncadd [#allocation12], %s97
      %s100 = sshll.u32 [#allocation11], 4
      %s101 = int_to_ptr.vmem [resolvable:$true] %s100
      %103 = dma.hbm_to_vmem [thread:$0]  %s11, 16, %s101, [#allocation12]
    $region49: #{decoder_forward.1} parent=1 // pred_fallthru
      _
    // Predicated region
    $region50: #{decoder_forward.1} parent=1 // pred_check
      _
    $region51: #{decoder_forward.1} parent=1 // pred_check_branch
      %105 = sbr.rel (0) target = $region53
    $region52: #{decoder_forward.1} parent=1 // pred_region
      %106 = dma.done [#allocation3], 256
    $region53: #{decoder_forward.1} parent=1 // pred_fallthru
      _
    // Predicated region
    $region54: #{decoder_forward.1} parent=1 // pred_check
      _
    $region55: #{decoder_forward.1} parent=1 // pred_check_branch
      %108 = sbr.rel (0) target = $region57
    $region56: #{decoder_forward.1} parent=1 // pred_region
      %109 = dma.done [#allocation6], 128
    $region57: #{decoder_forward.1} parent=1 // pred_fallthru
      _
    // Predicated region
    $region58: #{decoder_forward.1} parent=1 // pred_check
      _
    $region59: #{decoder_forward.1} parent=1 // pred_check_branch
      %111 = sbr.rel (0) target = $region61
    $region60: #{decoder_forward.1} parent=1 // pred_region
      %112 = dma.done [#allocation6], 16
    $region61: #{decoder_forward.1} parent=1 // pred_fallthru
      _
    // Predicated region
    $region62: #{decoder_forward.1} parent=1 // pred_check
      _
    $region63: #{decoder_forward.1} parent=1 // pred_check_branch
      %114 = sbr.rel (0) target = $region65
    $region64: #{decoder_forward.1} parent=1 // pred_region
      %115 = dma.done [#allocation9], 16
    $region65: #{decoder_forward.1} parent=1 // pred_fallthru
      _
    // Predicated region
    $region66: #{decoder_forward.1} parent=1 // pred_check
      _
    $region67: #{decoder_forward.1} parent=1 // pred_check_branch
      %117 = sbr.rel (0) target = $region69
    $region68: #{decoder_forward.1} parent=1 // pred_region
      %118 = dma.done [#allocation9], 256
    $region69: #{decoder_forward.1} parent=1 // pred_fallthru
      _
    // Predicated region
    $region70: #{decoder_forward.1} parent=1 // pred_check
      _
    $region71: #{decoder_forward.1} parent=1 // pred_check_branch
      %120 = sbr.rel (0) target = $region73
    $region72: #{decoder_forward.1} parent=1 // pred_region
      %121 = dma.done [#allocation12], 16
    $region73: #{decoder_forward.1} parent=1 // pred_fallthru
      _
    %p123 = scmp.eq.s32.totalorder 0, 0
    // Predicated region
    $region74: #{decoder_forward.1} parent=1 // pred_check
      %p124 = pneg %p123
    $region75: #{decoder_forward.1} parent=1 // pred_check_branch
      %126 = sbr.rel (%p124) target = $region77
    $region76: #{decoder_forward.1} parent=1 // pred_region
      %v127 = vld [vmem:[%s2] sm:$0xff]
      %v128 = vld [vmem:[%s2 + $0x8] sm:$0xff]
      %vm129 = vcmask 261120
      %130 = vst.msk [vmem:[%s13] sm:$0xff] %vm129, %v127
      %131 = vst.msk [vmem:[%s13 + $0x8] sm:$0xff] %vm129, %v128
      %v132 = vld [vmem:[#allocation2] sm:$0xff]
      %v133 = vld [vmem:[#allocation2 + $0x8] sm:$0xff]
      %134 = vst.msk [vmem:[#allocation14] sm:$0xff] %vm129, %v132
      %135 = vst.msk [vmem:[#allocation14 + $0x8] sm:$0xff] %vm129, %v133
    $region77: #{decoder_forward.1} parent=1 // pred_fallthru
      _
    %v136 = vld [vmem:[%s0] sm:$0xff]
    %v137 = vlaneseq
    %v138 = vand.u32 %v137, 127
    %139 = vset.pattern.permute.xlu0 0
    %140 = vperm.xlu0 %139, %v136
    %v141 = vpop.permute.xlu0 %140
    %vm142 = vcmp.eq.s32.totalorder %v141, %v138
    %v143 = vsel %vm142, 1, 0
    %v144 = vcvt.s32.f32 %v143
    %v145 = vpack.c.bf16 %v144, %v144
    %v146 = vld [vmem:[%s1] sm:$0xf]
    %v147 = vld [vmem:[%s1 + $0x4] sm:$0xf]
    %v148 = vld [vmem:[%s1 + $0x8] sm:$0xf]
    %v149 = vld [vmem:[%s1 + $0xc] sm:$0xf]
    %v154 = vunpack.c.l.b16 %v146
    %v155 = vunpack.c.l.b16 %v147
    %v156 = vunpack.c.l.b16 %v148
    %v157 = vunpack.c.l.b16 %v149
    %v158 = vpack.c.b16 %v155, %v154
    %v159 = vpack.c.b16 %v157, %v156
    %vm162 = vcmask 261120
    %v164 = vsel %vm162, %v145, 0
    %166 = vmatprep.subr.bf16.mxu0 0
    %167 = vmatpush1.bf16.msra.mxu0 %v158
    %168 = vmatprep.subr.bf16.mxu0 0
    %169 = vmatpush1.bf16.msra.mxu0 %v159
    %170 = vmatprep.subr.bf16.mxu0 0
    %171 = vmatpush1.bf16.msra.mxu0 0
    %172 = vmatprep.subr.bf16.mxu0 0
    %173 = vmatpush1.bf16.msra.mxu0 0
    %174 = vmatprep.subr.bf16.mxu0 0
    %175 = vmatpush1.bf16.msra.mxu0 0
    %176 = vmatprep.subr.bf16.mxu0 0
    %177 = vmatpush1.bf16.msra.mxu0 0
    %178 = vmatprep.subr.bf16.mxu0 0
    %179 = vmatpush1.bf16.msra.mxu0 0
    %180 = vmatprep.subr.bf16.mxu0 0
    %181 = vmatpush1.bf16.msra.mxu0 0
    %182 = vmatprep.subr.bf16.mxu0 0
    %183 = vmatpush1.bf16.msra.mxu0 0
    %184 = vmatprep.subr.bf16.mxu0 0
    %185 = vmatpush1.bf16.msra.mxu0 0
    %186 = vmatprep.subr.bf16.mxu0 0
    %187 = vmatpush1.bf16.msra.mxu0 0
    %188 = vmatprep.subr.bf16.mxu0 0
    %189 = vmatpush1.bf16.msra.mxu0 0
    %190 = vmatprep.subr.bf16.mxu0 0
    %191 = vmatpush1.bf16.msra.mxu0 0
    %192 = vmatprep.subr.bf16.mxu0 0
    %193 = vmatpush1.bf16.msra.mxu0 0
    %194 = vmatprep.subr.bf16.mxu0 0
    %195 = vmatpush1.bf16.msra.mxu0 0
    %196 = vmatprep.subr.bf16.mxu0 0
    %197 = vmatpush1.bf16.msra.mxu0 0
    %198 = vmatprep.mubr.bf16.mxu0 0
    %199 = vmatmul.mubr.bf16.gmra.mrb[0].mxu0 %v164
    %v200 = vpop.f32.mrb[0].mxu0
    %v201 = vadd.f32 0.0, %v200
    %v202 = vpop.f32.mrb[0].mxu0
    %v203 = vpop.f32.mrb[0].mxu0
    %v204 = vpop.f32.mrb[0].mxu0
    %205 = vdwg.mxu0
    %v206 = vld [vmem:[%s13] sm:$0xff]
    %v207 = vld [vmem:[#allocation14] sm:$0xff]
    %v208 = vpack.c.bf16 %v201, %v201
    %v209 = vld [vmem:[#allocation5] sm:$0xf]
    %v210 = vld [vmem:[#allocation5 + $0x4] sm:$0xf]
    %v211 = vpack.c.bf16 %v206, %v206
    %v212 = vld [vmem:[%s6] sm:$0xf]
    %v213 = vld [vmem:[%s6 + $0x4] sm:$0xf]
    %v214 = vld [vmem:[%s6 + $0x8] sm:$0xf]
    %v215 = vld [vmem:[%s6 + $0xc] sm:$0xf]
    %v220 = vunpack.c.l.b16 %v212
    %v221 = vunpack.c.l.b16 %v213
    %v222 = vunpack.c.l.b16 %v214
    %v223 = vunpack.c.l.b16 %v215
    %v224 = vpack.c.b16 %v221, %v220
    %v225 = vpack.c.b16 %v223, %v222
    %v229 = vsel %vm162, %v211, 0
    %231 = vmatprep.subr.bf16.mxu0 0
    %232 = vmatpush1.bf16.msra.mxu0 %v224
    %233 = vmatprep.subr.bf16.mxu0 0
    %234 = vmatpush1.bf16.msra.mxu0 %v225
    %235 = vmatprep.subr.bf16.mxu0 0
    %236 = vmatpush1.bf16.msra.mxu0 0
    %237 = vmatprep.subr.bf16.mxu0 0
    %238 = vmatpush1.bf16.msra.mxu0 0
    %239 = vmatprep.subr.bf16.mxu0 0
    %240 = vmatpush1.bf16.msra.mxu0 0
    %241 = vmatprep.subr.bf16.mxu0 0
    %242 = vmatpush1.bf16.msra.mxu0 0
    %243 = vmatprep.subr.bf16.mxu0 0
    %244 = vmatpush1.bf16.msra.mxu0 0
    %245 = vmatprep.subr.bf16.mxu0 0
    %246 = vmatpush1.bf16.msra.mxu0 0
    %247 = vmatprep.subr.bf16.mxu0 0
    %248 = vmatpush1.bf16.msra.mxu0 0
    %249 = vmatprep.subr.bf16.mxu0 0
    %250 = vmatpush1.bf16.msra.mxu0 0
    %251 = vmatprep.subr.bf16.mxu0 0
    %252 = vmatpush1.bf16.msra.mxu0 0
    %253 = vmatprep.subr.bf16.mxu0 0
    %254 = vmatpush1.bf16.msra.mxu0 0
    %255 = vmatprep.subr.bf16.mxu0 0
    %256 = vmatpush1.bf16.msra.mxu0 0
    %257 = vmatprep.subr.bf16.mxu0 0
    %258 = vmatpush1.bf16.msra.mxu0 0
    %259 = vmatprep.subr.bf16.mxu0 0
    %260 = vmatpush1.bf16.msra.mxu0 0
    %261 = vmatprep.subr.bf16.mxu0 0
    %262 = vmatpush1.bf16.msra.mxu0 0
    %263 = vmatprep.mubr.bf16.mxu0 0
    %264 = vmatmul.mubr.bf16.gmra.mrb[0].mxu0 %v229
    %v265 = vpop.f32.mrb[0].mxu0
    %v266 = vadd.f32 0.0, %v265
    %v267 = vpop.f32.mrb[0].mxu0
    %v268 = vpop.f32.mrb[0].mxu0
    %v269 = vpop.f32.mrb[0].mxu0
    %270 = vdwg.mxu0
    %v273 = vunpack.c.l.b16 %v209
    %v274 = vunpack.c.l.b16 %v210
    %v275 = vpack.c.b16 %v274, %v273
    %vm277 = vcmask 130048
    %v279 = vsel %vm277, %v208, 0
    %281 = vmatprep.subr.bf16.mxu0 0
    %282 = vmatpush1.bf16.msra.mxu0 %v275
    %283 = vmatprep.subr.bf16.mxu0 0
    %284 = vmatpush1.bf16.msra.mxu0 0
    %285 = vmatprep.subr.bf16.mxu0 0
    %286 = vmatpush1.bf16.msra.mxu0 0
    %287 = vmatprep.subr.bf16.mxu0 0
    %288 = vmatpush1.bf16.msra.mxu0 0
    %289 = vmatprep.subr.bf16.mxu0 0
    %290 = vmatpush1.bf16.msra.mxu0 0
    %291 = vmatprep.subr.bf16.mxu0 0
    %292 = vmatpush1.bf16.msra.mxu0 0
    %293 = vmatprep.subr.bf16.mxu0 0
    %294 = vmatpush1.bf16.msra.mxu0 0
    %295 = vmatprep.subr.bf16.mxu0 0
    %296 = vmatpush1.bf16.msra.mxu0 0
    %297 = vmatprep.subr.bf16.mxu0 0
    %298 = vmatpush1.bf16.msra.mxu0 0
    %299 = vmatprep.subr.bf16.mxu0 0
    %300 = vmatpush1.bf16.msra.mxu0 0
    %301 = vmatprep.subr.bf16.mxu0 0
    %302 = vmatpush1.bf16.msra.mxu0 0
    %303 = vmatprep.subr.bf16.mxu0 0
    %304 = vmatpush1.bf16.msra.mxu0 0
    %305 = vmatprep.subr.bf16.mxu0 0
    %306 = vmatpush1.bf16.msra.mxu0 0
    %307 = vmatprep.subr.bf16.mxu0 0
    %308 = vmatpush1.bf16.msra.mxu0 0
    %309 = vmatprep.subr.bf16.mxu0 0
    %310 = vmatpush1.bf16.msra.mxu0 0
    %311 = vmatprep.subr.bf16.mxu0 0
    %312 = vmatpush1.bf16.msra.mxu0 0
    %313 = vmatprep.mubr.bf16.mxu0 0
    %314 = vmatmul.mubr.bf16.gmra.mrb[0].mxu0 %v279
    %v315 = vpop.f32.mrb[0].mxu0
    %v316 = vadd.f32 %v266, %v315
    %v317 = vpop.f32.mrb[0].mxu0
    %v318 = vpop.f32.mrb[0].mxu0
    %v319 = vpop.f32.mrb[0].mxu0
    %320 = vdwg.mxu0
    %v321 = vld [vmem:[#allocation7] sm:$0x1]
    %v323 = vlaneseq
    %v324 = vshrl.u32 %v323, 7
    %v325 = vsub.s32 0, %v324
    %v326 = vrot.slane %v321, %v325
    %v328 = vadd.f32 %v316, %v326
    %v329 = vxor.u32 %v328, 2147483648
    %v330 = vmul.f32 %v329, 1.442695
    %v331 = vpow.pop %v330
    %v332 = vadd.f32 %v331, 1.0
    %v333 = vrcp.pop %v332
    %v334 = vmul.f32 1.0, %v333
    %v335 = vtanh.pop %v328
    %337 = vrot.lane.b32.xlu0 %v207, 32
    %v338 = vpop.permute.xlu0 %337
    %v340 = vmul.f32 %v334, %v338
    %342 = vrot.lane.b32.xlu0 %v335, 64
    %v343 = vpop.permute.xlu0 %342
    %v345 = vmul.f32 %v334, %v343
    %347 = vrot.lane.b32.xlu0 %v345, 32
    %v348 = vpop.permute.xlu0 %347
    %v350 = vadd.f32 %v340, %v348
    %v351 = vtanh.pop %v350
    %353 = vrot.lane.b32.xlu0 %v351, 64
    %v354 = vpop.permute.xlu0 %353
    %v356 = vmul.f32 %v334, %v354
    %358 = vrot.lane.b32.xlu0 %v356, 32
    %v359 = vpop.permute.xlu0 %358
    %361 = vst.msk [vmem:[%s13] sm:$0xff] %vm162, %v359
    %363 = vrot.lane.b32.xlu0 %v350, 96
    %v364 = vpop.permute.xlu0 %363
    %366 = vst.msk [vmem:[#allocation14] sm:$0xff] %vm162, %v364
    %s367 = scalar_lea.vmem %s13, 8
    %v368 = vld [vmem:[%s367] sm:$0xff]
    %s369 = scalar_lea.vmem [#allocation14], 8
    %v370 = vld [vmem:[%s369] sm:$0xff]
    %v371 = vpack.c.bf16 %v356, %v356
    %v372 = vld [vmem:[%s5] sm:$0xf]
    %v373 = vld [vmem:[%s5 + $0x4] sm:$0xf]
    %v374 = vld [vmem:[%s5 + $0x8] sm:$0xf]
    %v375 = vld [vmem:[%s5 + $0xc] sm:$0xf]
    %v376 = vpack.c.bf16 %v368, %v368
    %v377 = vld [vmem:[%s7] sm:$0xf]
    %v378 = vld [vmem:[%s7 + $0x4] sm:$0xf]
    %v379 = vld [vmem:[%s7 + $0x8] sm:$0xf]
    %v380 = vld [vmem:[%s7 + $0xc] sm:$0xf]
    %v385 = vunpack.c.l.b16 %v377
    %v386 = vunpack.c.l.b16 %v378
    %v387 = vunpack.c.l.b16 %v379
    %v388 = vunpack.c.l.b16 %v380
    %v389 = vpack.c.b16 %v386, %v385
    %v390 = vpack.c.b16 %v388, %v387
    %v394 = vsel %vm162, %v376, 0
    %396 = vmatprep.subr.bf16.mxu0 0
    %397 = vmatpush1.bf16.msra.mxu0 %v389
    %398 = vmatprep.subr.bf16.mxu0 0
    %399 = vmatpush1.bf16.msra.mxu0 %v390
    %400 = vmatprep.subr.bf16.mxu0 0
    %401 = vmatpush1.bf16.msra.mxu0 0
    %402 = vmatprep.subr.bf16.mxu0 0
    %403 = vmatpush1.bf16.msra.mxu0 0
    %404 = vmatprep.subr.bf16.mxu0 0
    %405 = vmatpush1.bf16.msra.mxu0 0
    %406 = vmatprep.subr.bf16.mxu0 0
    %407 = vmatpush1.bf16.msra.mxu0 0
    %408 = vmatprep.subr.bf16.mxu0 0
    %409 = vmatpush1.bf16.msra.mxu0 0
    %410 = vmatprep.subr.bf16.mxu0 0
    %411 = vmatpush1.bf16.msra.mxu0 0
    %412 = vmatprep.subr.bf16.mxu0 0
    %413 = vmatpush1.bf16.msra.mxu0 0
    %414 = vmatprep.subr.bf16.mxu0 0
    %415 = vmatpush1.bf16.msra.mxu0 0
    %416 = vmatprep.subr.bf16.mxu0 0
    %417 = vmatpush1.bf16.msra.mxu0 0
    %418 = vmatprep.subr.bf16.mxu0 0
    %419 = vmatpush1.bf16.msra.mxu0 0
    %420 = vmatprep.subr.bf16.mxu0 0
    %421 = vmatpush1.bf16.msra.mxu0 0
    %422 = vmatprep.subr.bf16.mxu0 0
    %423 = vmatpush1.bf16.msra.mxu0 0
    %424 = vmatprep.subr.bf16.mxu0 0
    %425 = vmatpush1.bf16.msra.mxu0 0
    %426 = vmatprep.subr.bf16.mxu0 0
    %427 = vmatpush1.bf16.msra.mxu0 0
    %428 = vmatprep.mubr.bf16.mxu0 0
    %429 = vmatmul.mubr.bf16.gmra.mrb[0].mxu0 %v394
    %v430 = vpop.f32.mrb[0].mxu0
    %v431 = vadd.f32 0.0, %v430
    %v432 = vpop.f32.mrb[0].mxu0
    %v433 = vpop.f32.mrb[0].mxu0
    %v434 = vpop.f32.mrb[0].mxu0
    %435 = vdwg.mxu0
    %437 = vrot.lane.b32.xlu0 %v371, 32
    %v438 = vpop.permute.xlu0 %437
    %v443 = vunpack.c.l.b16 %v372
    %v444 = vunpack.c.l.b16 %v373
    %v445 = vunpack.c.l.b16 %v374
    %v446 = vunpack.c.l.b16 %v375
    %v447 = vpack.c.b16 %v444, %v443
    %v448 = vpack.c.b16 %v446, %v445
    %v452 = vsel %vm162, %v438, 0
    %454 = vmatprep.subr.bf16.mxu0 0
    %455 = vmatpush1.bf16.msra.mxu0 %v447
    %456 = vmatprep.subr.bf16.mxu0 0
    %457 = vmatpush1.bf16.msra.mxu0 %v448
    %458 = vmatprep.subr.bf16.mxu0 0
    %459 = vmatpush1.bf16.msra.mxu0 0
    %460 = vmatprep.subr.bf16.mxu0 0
    %461 = vmatpush1.bf16.msra.mxu0 0
    %462 = vmatprep.subr.bf16.mxu0 0
    %463 = vmatpush1.bf16.msra.mxu0 0
    %464 = vmatprep.subr.bf16.mxu0 0
    %465 = vmatpush1.bf16.msra.mxu0 0
    %466 = vmatprep.subr.bf16.mxu0 0
    %467 = vmatpush1.bf16.msra.mxu0 0
    %468 = vmatprep.subr.bf16.mxu0 0
    %469 = vmatpush1.bf16.msra.mxu0 0
    %470 = vmatprep.subr.bf16.mxu0 0
    %471 = vmatpush1.bf16.msra.mxu0 0
    %472 = vmatprep.subr.bf16.mxu0 0
    %473 = vmatpush1.bf16.msra.mxu0 0
    %474 = vmatprep.subr.bf16.mxu0 0
    %475 = vmatpush1.bf16.msra.mxu0 0
    %476 = vmatprep.subr.bf16.mxu0 0
    %477 = vmatpush1.bf16.msra.mxu0 0
    %478 = vmatprep.subr.bf16.mxu0 0
    %479 = vmatpush1.bf16.msra.mxu0 0
    %480 = vmatprep.subr.bf16.mxu0 0
    %481 = vmatpush1.bf16.msra.mxu0 0
    %482 = vmatprep.subr.bf16.mxu0 0
    %483 = vmatpush1.bf16.msra.mxu0 0
    %484 = vmatprep.subr.bf16.mxu0 0
    %485 = vmatpush1.bf16.msra.mxu0 0
    %486 = vmatprep.mubr.bf16.mxu0 0
    %487 = vmatmul.mubr.bf16.gmra.mrb[0].mxu0 %v452
    %v488 = vpop.f32.mrb[0].mxu0
    %v489 = vadd.f32 %v431, %v488
    %v490 = vpop.f32.mrb[0].mxu0
    %v491 = vpop.f32.mrb[0].mxu0
    %v492 = vpop.f32.mrb[0].mxu0
    %493 = vdwg.mxu0
    %v494 = vld [vmem:[#allocation8] sm:$0x1]
    %v496 = vlaneseq
    %v497 = vshrl.u32 %v496, 7
    %v498 = vsub.s32 0, %v497
    %v499 = vrot.slane %v494, %v498
    %v501 = vadd.f32 %v489, %v499
    %v502 = vxor.u32 %v501, 2147483648
    %v503 = vmul.f32 %v502, 1.442695
    %v504 = vpow.pop %v503
    %v505 = vadd.f32 %v504, 1.0
    %v506 = vrcp.pop %v505
    %v507 = vmul.f32 1.0, %v506
    %v508 = vtanh.pop %v501
    %510 = vrot.lane.b32.xlu0 %v370, 32
    %v511 = vpop.permute.xlu0 %510
    %v513 = vmul.f32 %v507, %v511
    %515 = vrot.lane.b32.xlu0 %v508, 64
    %v516 = vpop.permute.xlu0 %515
    %v518 = vmul.f32 %v507, %v516
    %520 = vrot.lane.b32.xlu0 %v518, 32
    %v521 = vpop.permute.xlu0 %520
    %v523 = vadd.f32 %v513, %v521
    %v524 = vtanh.pop %v523
    %526 = vrot.lane.b32.xlu0 %v524, 64
    %v527 = vpop.permute.xlu0 %526
    %v529 = vmul.f32 %v507, %v527
    %531 = vrot.lane.b32.xlu0 %v529, 32
    %v532 = vpop.permute.xlu0 %531
    %534 = vst.msk [vmem:[%s367] sm:$0xff] %vm162, %v532
    %536 = vrot.lane.b32.xlu0 %v523, 96
    %v537 = vpop.permute.xlu0 %536
    %539 = vst.msk [vmem:[%s369] sm:$0xff] %vm162, %v537
    %v540 = vpack.c.bf16 %v529, %v529
    %v541 = vld [vmem:[#allocation10] sm:$0xf]
    %v542 = vld [vmem:[#allocation10 + $0x4] sm:$0xf]
    %v543 = vld [vmem:[#allocation10 + $0x8] sm:$0xf]
    %v544 = vld [vmem:[#allocation10 + $0xc] sm:$0xf]
    %v545 = vld [vmem:[#allocation11] sm:$0x1]
    %v547 = vlaneseq
    %v548 = vshrl.u32 %v547, 7
    %v549 = vsub.s32 0, %v548
    %v550 = vrot.slane %v545, %v549
    %553 = vrot.lane.b32.xlu0 %v540, 32
    %v554 = vpop.permute.xlu0 %553
    %v559 = vunpack.c.l.b16 %v541
    %v560 = vunpack.c.l.b16 %v542
    %v561 = vunpack.c.l.b16 %v543
    %v562 = vunpack.c.l.b16 %v544
    %v563 = vpack.c.b16 %v560, %v559
    %v564 = vpack.c.b16 %v562, %v561
    %v568 = vsel %vm162, %v554, 0
    %570 = vmatprep.subr.bf16.mxu0 0
    %571 = vmatpush1.bf16.msra.mxu0 %v563
    %572 = vmatprep.subr.bf16.mxu0 0
    %573 = vmatpush1.bf16.msra.mxu0 %v564
    %574 = vmatprep.subr.bf16.mxu0 0
    %575 = vmatpush1.bf16.msra.mxu0 0
    %576 = vmatprep.subr.bf16.mxu0 0
    %577 = vmatpush1.bf16.msra.mxu0 0
    %578 = vmatprep.subr.bf16.mxu0 0
    %579 = vmatpush1.bf16.msra.mxu0 0
    %580 = vmatprep.subr.bf16.mxu0 0
    %581 = vmatpush1.bf16.msra.mxu0 0
    %582 = vmatprep.subr.bf16.mxu0 0
    %583 = vmatpush1.bf16.msra.mxu0 0
    %584 = vmatprep.subr.bf16.mxu0 0
    %585 = vmatpush1.bf16.msra.mxu0 0
    %586 = vmatprep.subr.bf16.mxu0 0
    %587 = vmatpush1.bf16.msra.mxu0 0
    %588 = vmatprep.subr.bf16.mxu0 0
    %589 = vmatpush1.bf16.msra.mxu0 0
    %590 = vmatprep.subr.bf16.mxu0 0
    %591 = vmatpush1.bf16.msra.mxu0 0
    %592 = vmatprep.subr.bf16.mxu0 0
    %593 = vmatpush1.bf16.msra.mxu0 0
    %594 = vmatprep.subr.bf16.mxu0 0
    %595 = vmatpush1.bf16.msra.mxu0 0
    %596 = vmatprep.subr.bf16.mxu0 0
    %597 = vmatpush1.bf16.msra.mxu0 0
    %598 = vmatprep.subr.bf16.mxu0 0
    %599 = vmatpush1.bf16.msra.mxu0 0
    %600 = vmatprep.subr.bf16.mxu0 0
    %601 = vmatpush1.bf16.msra.mxu0 0
    %602 = vmatprep.mubr.bf16.mxu0 0
    %603 = vmatmul.mubr.bf16.gmra.mrb[0].mxu0 %v568
    %v604 = vpop.f32.mrb[0].mxu0
    %v605 = vadd.f32 %v550, %v604
    %v606 = vpop.f32.mrb[0].mxu0
    %v607 = vpop.f32.mrb[0].mxu0
    %v608 = vpop.f32.mrb[0].mxu0
    %609 = vdwg.mxu0
    %610 = vst.msk [vmem:[#allocation13] sm:$0xff] %vm162, %v605
    // Predicated region
    $region78: #{decoder_forward.1} parent=1 // pred_check
      _
    $region79: #{decoder_forward.1} parent=1 // pred_check_branch
      %612 = sbr.rel (0) target = $region81
    $region80: #{decoder_forward.1} parent=1 // pred_region
      %s614 = ssub.s32 128, 128
      %615 = vsyncadd [#allocation4], %s614
      %s617 = sshll.u32 [#allocation13], 4
      %s618 = int_to_ptr.vmem [resolvable:$true] %s617
      %620 = dma.vmem_to_hbm [thread:$0]  %s618, 128, %s12, [#allocation4]
    $region81: #{decoder_forward.1} parent=1 // pred_fallthru
      _
    // Predicated region
    $region82: #{decoder_forward.1} parent=1 // pred_check
      _
    $region83: #{decoder_forward.1} parent=1 // pred_check_branch
      %622 = sbr.rel (0) target = $region85
    $region84: #{decoder_forward.1} parent=1 // pred_region
      _
    $region85: #{decoder_forward.1} parent=1 // pred_fallthru
      _
    // Predicated region
    $region86: #{decoder_forward.1} parent=1 // pred_check
      _
    $region87: #{decoder_forward.1} parent=1 // pred_check_branch
      %624 = sbr.rel (0) target = $region89
    $region88: #{decoder_forward.1} parent=1 // pred_region
      %s626 = ssub.s32 256, 256
      %627 = vsyncadd [#allocation15], %s626
      %s628 = sshll.u32 [#allocation14], 4
      %s629 = int_to_ptr.vmem [resolvable:$true] %s628
      %634 = dma.vmem_to_hbm [thread:$0]  %s629, 256, %s14, [#allocation15], 128, 128, 8
    $region89: #{decoder_forward.1} parent=1 // pred_fallthru
      _
    // Predicated region
    $region90: #{decoder_forward.1} parent=1 // pred_check
      _
    $region91: #{decoder_forward.1} parent=1 // pred_check_branch
      %636 = sbr.rel (0) target = $region93
    $region92: #{decoder_forward.1} parent=1 // pred_region
      %637 = dma.done [#allocation4], 128
    $region93: #{decoder_forward.1} parent=1 // pred_fallthru
      _
    // Predicated region
    $region94: #{decoder_forward.1} parent=1 // pred_check
      _
    $region95: #{decoder_forward.1} parent=1 // pred_check_branch
      %639 = sbr.rel (0) target = $region97
    $region96: #{decoder_forward.1} parent=1 // pred_region
      _
    $region97: #{decoder_forward.1} parent=1 // pred_fallthru
      _
    // Predicated region
    $region98: #{decoder_forward.1} parent=1 // pred_check
      _
    $region99: #{decoder_forward.1} parent=1 // pred_check_branch
      %641 = sbr.rel (0) target = $region101
    $region100: #{decoder_forward.1} parent=1 // pred_region
      %642 = dma.done [#allocation15], 256
    $region101: #{decoder_forward.1} parent=1 // pred_fallthru
      _
    %643 = vsyncpa [#allocation3], 1
    %644 = vsyncpa [#allocation6], 1
    %645 = vsyncpa [#allocation9], 1
    %646 = vsyncpa [#allocation12], 1
    %647 = vsyncpa [#allocation4], 1
    %648 = vsyncpa [#allocation15], 1

</llo_original>
